<compile_context>
chip_gen: v5e
topology: v5e:2x2
jax: 0.10.0
libtpu: 0.0.40
codegen_flags: <defaults>
</compile_context>

<pallas_src>
import functools

import jax
import jax.numpy as jnp
from jax.experimental import pallas as pl
from jax.experimental.pallas import tpu as pltpu

_LANE = 128              # lane width / class-axis padding
_SUBLANE = 8             # f32 sublane
_MAX_TILE_N = 4096       # rows per grid step (fits all generations' scoped VMEM)
_SINGLE_TILE_MAX = 1024  # below this, just use a single tile
_MIN_GRID = 4            # keep >= 4 steps for large N (2 TCs on v7x, pipelining)
_NEG = -1e30             # finite "minus infinity" for padded vocab lanes
_VMEM_LIMIT = 32 * 1024 * 1024


def _round_up(x, m):
    return ((x + m - 1) // m) * m


# ----------------------------------------------------------------------------- kernel helpers
def _lookup_and_ce(tok_ref, table_ref, vocab_size):
    """Shared body: one-hot MXU gather + per-row cross entropy.

    tok_ref: (TILE_N, 2) int32 (idx, target); table_ref: (Vpad, Vpad) f32 (resident).
    Returns (logits (TILE_N, Vpad) f32 with padded lanes = -1e30, per_row (TILE_N, 1)).
    """
    tn = tok_ref.shape[0]
    vpad = table_ref.shape[1]

    col = jax.lax.broadcasted_iota(jnp.int32, (tn, vpad), 1)
    tok = tok_ref[...]                      # (TILE_N, 2)
    idx = tok[:, 0:1]                       # (TILE_N, 1)
    tgt = tok[:, 1:2]                       # (TILE_N, 1)

    # Embedding lookup as one-hot @ table on the MXU.  HIGHEST precision keeps the
    # gathered f32 rows exact (single nonzero term per output element).
    onehot = (col == idx).astype(jnp.float32)
    logits = jnp.dot(onehot, table_ref[...],
                     preferred_element_type=jnp.float32,
                     precision=jax.lax.Precision.HIGHEST)
    # Mask padded vocab lanes so logsumexp (and any downstream softmax on the padded
    # slab) ignores them.  -1e30 stays finite -> no NaN paths.
    logits = jnp.where(col < vocab_size, logits, _NEG)

    m = jnp.max(logits, axis=-1, keepdims=True)                         # (TILE_N, 1)
    lse = m + jnp.log(jnp.sum(jnp.exp(logits - m), axis=-1, keepdims=True))
    picked = jnp.sum(jnp.where(col == tgt, logits, 0.0),
                     axis=-1, keepdims=True)                            # (TILE_N, 1)
    return logits, lse - picked


def _masked_tile_sum(per_row, n_valid):
    """Zero out rows >= n_valid (grid-global) and reduce to a (1, 1, 1) partial sum."""
    tn = per_row.shape[0]
    row = pl.program_id(0) * tn + jax.lax.broadcasted_iota(jnp.int32, (tn, 1), 0)
    per_row = jnp.where(row < n_valid, per_row, 0.0)
    return jnp.sum(per_row, axis=0, keepdims=True).reshape(1, 1, 1)


# ----------------------------------------------------------------------------- kernels
def _bigram_train_kernel(tok_ref, table_ref, logits_ref, loss_ref, *, n_valid, vocab_size):
    logits, per_row = _lookup_and_ce(tok_ref, table_ref, vocab_size)
    logits_ref[...] = logits                                 # lane-dense (TILE_N, 128) store
    loss_ref[...] = _masked_tile_sum(per_row, n_valid)       # per-tile partial sum


def _bigram_loss_kernel(tok_ref, table_ref, loss_ref, *, n_valid, vocab_size):
    # Loss-only fast path: no logits writeback (>95% of the HBM bytes removed).
    _, per_row = _lookup_and_ce(tok_ref, table_ref, vocab_size)
    loss_ref[...] = _masked_tile_sum(per_row, n_valid)


def _bigram_logits_kernel(idx_ref, table_ref, logits_ref, *, vocab_size):
    # Inference path: lookup only, no softmax/cross-entropy work.
    tn = idx_ref.shape[0]
    vpad = table_ref.shape[1]
    col = jax.lax.broadcasted_iota(jnp.int32, (tn, vpad), 1)
    onehot = (col == idx_ref[...]).astype(jnp.float32)
    logits = jnp.dot(onehot, table_ref[...],
                     preferred_element_type=jnp.float32,
                     precision=jax.lax.Precision.HIGHEST)
    logits_ref[...] = jnp.where(col < vocab_size, logits, _NEG)


# ----------------------------------------------------------------------------- pallas_call wrappers
def _compiler_params():
    return pltpu.CompilerParams(dimension_semantics=("parallel",),
                                vmem_limit_bytes=_VMEM_LIMIT)


@functools.partial(jax.jit, static_argnames=("tile_n", "n_valid", "vocab_size"))
def _bigram_train_call(tok2d, table_pad, *, tile_n, n_valid, vocab_size):
    npad = tok2d.shape[0]
    vpad = table_pad.shape[0]
    num_tiles = npad // tile_n
    kernel = functools.partial(_bigram_train_kernel, n_valid=n_valid, vocab_size=vocab_size)
    return pl.pallas_call(
        kernel,
        grid=(num_tiles,),
        in_specs=[
            pl.BlockSpec((tile_n, 2), lambda i: (i, 0)),        # packed (idx, target)
            pl.BlockSpec((vpad, vpad), lambda i: (0, 0)),       # table resident in VMEM
        ],
        out_specs=(
            pl.BlockSpec((tile_n, vpad), lambda i: (i, 0)),     # lane-dense logits
            pl.BlockSpec((1, 1, 1), lambda i: (i, 0, 0)),       # per-tile loss partial
        ),
        out_shape=(
            jax.ShapeDtypeStruct((npad, vpad), jnp.float32),
            jax.ShapeDtypeStruct((num_tiles, 1, 1), jnp.float32),
        ),
        compiler_params=_compiler_params(),
    )(tok2d, table_pad)


@functools.partial(jax.jit, static_argnames=("tile_n", "n_valid", "vocab_size"))
def _bigram_loss_call(tok2d, table_pad, *, tile_n, n_valid, vocab_size):
    npad = tok2d.shape[0]
    vpad = table_pad.shape[0]
    num_tiles = npad // tile_n
    kernel = functools.partial(_bigram_loss_kernel, n_valid=n_valid, vocab_size=vocab_size)
    return pl.pallas_call(
        kernel,
        grid=(num_tiles,),
        in_specs=[
            pl.BlockSpec((tile_n, 2), lambda i: (i, 0)),
            pl.BlockSpec((vpad, vpad), lambda i: (0, 0)),
        ],
        out_specs=pl.BlockSpec((1, 1, 1), lambda i: (i, 0, 0)),
        out_shape=jax.ShapeDtypeStruct((num_tiles, 1, 1), jnp.float32),
        compiler_params=_compiler_params(),
    )(tok2d, table_pad)


@functools.partial(jax.jit, static_argnames=("tile_n", "vocab_size"))
def _bigram_logits_call(idx2d, table_pad, *, tile_n, vocab_size):
    npad = idx2d.shape[0]
    vpad = table_pad.shape[0]
    kernel = functools.partial(_bigram_logits_kernel, vocab_size=vocab_size)
    return pl.pallas_call(
        kernel,
        grid=(npad // tile_n,),
        in_specs=[
            pl.BlockSpec((tile_n, 1), lambda i: (i, 0)),
            pl.BlockSpec((vpad, vpad), lambda i: (0, 0)),
        ],
        out_specs=pl.BlockSpec((tile_n, vpad), lambda i: (i, 0)),
        out_shape=jax.ShapeDtypeStruct((npad, vpad), jnp.float32),
        compiler_params=_compiler_params(),
    )(idx2d, table_pad)


def _choose_tiling(n):
    """Return (tile_n, npad): npad multiple of tile_n, tile_n multiple of 8.

    Small problems run as a single tile; larger ones use the biggest tile that keeps
    the grid >= _MIN_GRID steps (so v7x's two TensorCores each get pipelined work),
    capped at _MAX_TILE_N (VMEM working set ~8 MiB per step at 4096 rows).
    """
    npad = _round_up(n, _SUBLANE)
    if npad <= _SINGLE_TILE_MAX:
        return npad, npad
    tile_n = min(_MAX_TILE_N, _round_up(-(-npad // _MIN_GRID), _SUBLANE))
    npad = _round_up(npad, tile_n)
    return tile_n, npad


# ----------------------------------------------------------------------------- model
class BigramLanguageModel:
    """JAX/Pallas port of the PyTorch BigramLanguageModel forward pass."""

    def __init__(self, vocab_size, key):
        self.vocab_size = vocab_size
        self.vpad = _round_up(vocab_size, _LANE)
        # nn.Embedding default init: N(0, 1)
        self.token_embedding_table = jax.random.normal(
            key, (vocab_size, vocab_size), dtype=jnp.float32)
        # Lane-dense zero-padded copy used by the kernels; padded vocab lanes are
        # masked to -1e30 in-kernel, padded rows are never selected (idx < V).
        self._table_pad = jnp.zeros((self.vpad, self.vpad), dtype=jnp.float32).at[
            :vocab_size, :vocab_size].set(self.token_embedding_table)

    # --- input prep -----------------------------------------------------------
    def _prep_idx(self, x, npad):
        flat = x.reshape(-1).astype(jnp.int32)
        n = flat.shape[0]
        if npad != n:
            flat = jnp.pad(flat, (0, npad - n))      # pad rows masked/sliced later
        return flat.reshape(npad, 1)

    def _prep_pair(self, idx, targets, npad):
        i = idx.reshape(-1).astype(jnp.int32)
        t = targets.reshape(-1).astype(jnp.int32)
        tok = jnp.stack([i, t], axis=1)              # (N, 2) packed tokens
        n = tok.shape[0]
        if npad != n:
            tok = jnp.pad(tok, ((0, npad - n), (0, 0)))
        return tok

    # --- forward ---------------------------------------------------------------
    def forward(self, idx, targets=None, *, loss_only=False, pad_logits=False):
        """Matches PyTorch semantics by default.

        loss_only=True  (targets required): skip the logits HBM writeback, return (None, loss).
        pad_logits=True: return the lane-dense padded logits slab (npad, 128) instead of
                         slicing to the exact (N, C) / (B, T, C) shape (saves an extra
                         full HBM pass in the wrapper).
        """
        B, T = idx.shape
        N = B * T
        tile_n, npad = _choose_tiling(N)

        if targets is None:
            idx2d = self._prep_idx(idx, npad)
            logits_pad = _bigram_logits_call(
                idx2d, self._table_pad, tile_n=tile_n, vocab_size=self.vocab_size)
            if pad_logits:
                return logits_pad, None
            return logits_pad[:N, :self.vocab_size].reshape(B, T, self.vocab_size), None

        tok2d = self._prep_pair(idx, targets, npad)

        if loss_only:
            loss_parts = _bigram_loss_call(
                tok2d, self._table_pad, tile_n=tile_n, n_valid=N,
                vocab_size=self.vocab_size)
            return None, jnp.sum(loss_parts) / N

        logits_pad, loss_parts = _bigram_train_call(
            tok2d, self._table_pad, tile_n=tile_n, n_valid=N,
            vocab_size=self.vocab_size)
        loss = jnp.sum(loss_parts) / N
        if pad_logits:
            return logits_pad, loss
        # matches PyTorch: when targets given, returned logits are (B*T, C)
        return logits_pad[:N, :self.vocab_size], loss

    # TODO(synk): generate() uses torch.multinomial sampling inside a Python loop;
    # autoregressive decode/sampling is host-side glue and is not ported to the kernel.


# ----------------------------------------------------------------------------- tests
if __name__ == "__main__":
    vocab_size = 65  # e.g. tiny-shakespeare character vocab
    B, T = 2, 8

    k_tab, k_idx, k_tgt = jax.random.split(jax.random.PRNGKey(0), 3)
    model = BigramLanguageModel(vocab_size, k_tab)

    def ref_fwd(idx_, tgt_):
        rl = model.token_embedding_table[idx_.reshape(-1)]
        lse = jax.scipy.special.logsumexp(rl, axis=-1)
        pk = jnp.take_along_axis(rl, tgt_.reshape(-1, 1), axis=-1)[:, 0]
        return rl, jnp.mean(lse - pk)

    idx = jax.random.randint(k_idx, (B, T), 0, vocab_size, dtype=jnp.int32)
    targets = jax.random.randint(k_tgt, (B, T), 0, vocab_size, dtype=jnp.int32)

    logits, loss = model.forward(idx, targets)
    jax.block_until_ready((logits, loss))
    ref_logits, ref_loss = ref_fwd(idx, targets)
    assert logits.shape == (B * T, vocab_size)
    assert jnp.allclose(logits, ref_logits, atol=1e-5)
    assert jnp.allclose(loss, ref_loss, atol=1e-5, rtol=1e-4)

    # targets=None (inference) path: logits-only kernel.
    logits_inf, none_loss = model.forward(idx, None)
    jax.block_until_ready(logits_inf)
    assert logits_inf.shape == (B, T, vocab_size) and none_loss is None
    assert jnp.allclose(logits_inf.reshape(B * T, vocab_size), ref_logits, atol=1e-5)

    # Larger shape: exercises the multi-tile grid and in-kernel padded-row masking
    # (N=2100 -> tile 528, grid 4, 12 padded rows in the last tile).
    B2, T2 = 3, 700
    idx2 = jax.random.randint(k_idx, (B2, T2), 0, vocab_size, dtype=jnp.int32)
    tgt2 = jax.random.randint(k_tgt, (B2, T2), 0, vocab_size, dtype=jnp.int32)
    logits2, loss2 = model.forward(idx2, tgt2)
    jax.block_until_ready((logits2, loss2))
    ref_logits2, ref_loss2 = ref_fwd(idx2, tgt2)
    assert logits2.shape == (B2 * T2, vocab_size)
    assert jnp.allclose(logits2, ref_logits2, atol=1e-5)
    assert jnp.allclose(loss2, ref_loss2, atol=1e-5, rtol=1e-4)

    # Loss-only fast path (no logits HBM writeback).
    none_logits, loss2b = model.forward(idx2, tgt2, loss_only=True)
    jax.block_until_ready(loss2b)
    assert none_logits is None
    assert jnp.allclose(loss2b, ref_loss2, atol=1e-5, rtol=1e-4)

    # Lane-dense padded-logits path (skips the wrapper-side slice/copy).
    logits_padded, loss2c = model.forward(idx2, tgt2, pad_logits=True)
    jax.block_until_ready((logits_padded, loss2c))
    assert logits_padded.shape[1] == model.vpad
    assert jnp.allclose(logits_padded[:B2 * T2, :vocab_size], ref_logits2, atol=1e-5)
    assert jnp.allclose(loss2c, ref_loss2, atol=1e-5, rtol=1e-4)

    print("KERNEL_OK")
</pallas_src>

<mosaic_0001>
module attributes {stable_mosaic.version = 11 : i64} {
  func.func @_bigram_train_kernel(%arg0: i32, %arg1: memref<16x2xi32, #tpu.memory_space<vmem>>, %arg2: memref<128x128xf32, #tpu.memory_space<vmem>>, %arg3: memref<16x128xf32, #tpu.memory_space<vmem>>, %arg4: memref<1x1x1xf32, #tpu.memory_space<vmem>>) attributes {dimension_semantics = [#tpu.dimension_semantics<parallel>], iteration_bounds = array<i64: 1>, scalar_prefetch = 0 : i64, scratch_operands = 0 : i64, tpu.core_type = #tpu.core_type<tc>, window_params = [{transform_indices = @transform_0, window_bounds = array<i64: 16, 2>}, {pipeline_mode = #tpu.pipeline_mode<synchronous>, transform_indices = @transform_1, window_bounds = array<i64: 128, 128>}, {transform_indices = @transform_2, window_bounds = array<i64: 16, 128>}, {transform_indices = @transform_3, window_bounds = array<i64: 1, 1, 1>}]} {
    %0 = tpu.iota {dimensions = array<i32: 1>} : vector<16x128xi32>
    %c0 = arith.constant 0 : index
    %c0_0 = arith.constant 0 : index
    %1 = vector.load %arg1[%c0, %c0_0] : memref<16x2xi32, #tpu.memory_space<vmem>>, vector<16x2xi32>
    %2 = vector.extract_strided_slice %1 {offsets = [0, 0], sizes = [16, 1], strides = [1, 1]} : vector<16x2xi32> to vector<16x1xi32>
    %3 = vector.extract_strided_slice %1 {offsets = [0, 1], sizes = [16, 1], strides = [1, 1]} : vector<16x2xi32> to vector<16x1xi32>
    %4 = vector.broadcast %2 : vector<16x1xi32> to vector<16x128xi32>
    %5 = arith.cmpi eq, %0, %4 : vector<16x128xi32>
    %6 = arith.extui %5 : vector<16x128xi1> to vector<16x128xi32>
    %7 = arith.sitofp %6 : vector<16x128xi32> to vector<16x128xf32>
    %c0_1 = arith.constant 0 : index
    %c0_2 = arith.constant 0 : index
    %8 = vector.load %arg2[%c0_1, %c0_2] : memref<128x128xf32, #tpu.memory_space<vmem>>, vector<128x128xf32>
    %cst = arith.constant dense<0.000000e+00> : vector<16x128xf32>
    %9 = tpu.matmul %7, %8, %cst {dimension_numbers = #tpu.dot_dimension_numbers<[1], [0], [0], [1], [0, 0, 1, 1], [], []>, precision = #tpu.contract_precision<fp32>} : vector<16x128xf32>, vector<128x128xf32>, vector<16x128xf32> -> vector<16x128xf32>
    %c65_i32 = arith.constant 65 : i32
    %10 = vector.broadcast %c65_i32 : i32 to vector<16x128xi32>
    %11 = arith.cmpi slt, %0, %10 : vector<16x128xi32>
    %cst_3 = arith.constant -1.000000e+30 : f32
    %12 = vector.broadcast %cst_3 : f32 to vector<16x128xf32>
    %13 = arith.select %11, %9, %12 : vector<16x128xi1>, vector<16x128xf32>
    %cst_4 = arith.constant dense<0xFF800000> : vector<16xf32>
    %14 = vector.multi_reduction <maximumf>, %13, %cst_4 [1] : vector<16x128xf32> to vector<16xf32>
    %15 = vector.shape_cast %14 : vector<16xf32> to vector<16x1xf32>
    %16 = vector.broadcast %15 : vector<16x1xf32> to vector<16x128xf32>
    %17 = arith.subf %13, %16 : vector<16x128xf32>
    %18 = math.exp %17 : vector<16x128xf32>
    %cst_5 = arith.constant dense<0.000000e+00> : vector<16xf32>
    %19 = vector.multi_reduction <add>, %18, %cst_5 [1] : vector<16x128xf32> to vector<16xf32>
    %20 = vector.shape_cast %19 : vector<16xf32> to vector<16x1xf32>
    %21 = math.log %20 : vector<16x1xf32>
    %22 = arith.addf %15, %21 : vector<16x1xf32>
    %23 = vector.broadcast %3 : vector<16x1xi32> to vector<16x128xi32>
    %24 = arith.cmpi eq, %0, %23 : vector<16x128xi32>
    %cst_6 = arith.constant 0.000000e+00 : f32
    %25 = vector.broadcast %cst_6 : f32 to vector<16x128xf32>
    %26 = arith.select %24, %13, %25 : vector<16x128xi1>, vector<16x128xf32>
    %cst_7 = arith.constant dense<0.000000e+00> : vector<16xf32>
    %27 = vector.multi_reduction <add>, %26, %cst_7 [1] : vector<16x128xf32> to vector<16xf32>
    %28 = vector.shape_cast %27 : vector<16xf32> to vector<16x1xf32>
    %29 = arith.subf %22, %28 : vector<16x1xf32>
    %c0_8 = arith.constant 0 : index
    %c0_9 = arith.constant 0 : index
    %30 = vector.load %arg3[%c0_8, %c0_9] : memref<16x128xf32, #tpu.memory_space<vmem>>, vector<16x128xf32>
    tpu.vector_store %arg3[%c0_8, %c0_9], %13 {strides = array<i32>} : memref<16x128xf32, #tpu.memory_space<vmem>>, vector<16x128xf32>,
    %c16_i32 = arith.constant 16 : i32
    %31 = arith.muli %arg0, %c16_i32 : i32
    %32 = tpu.iota {dimensions = array<i32: 0>} : vector<16x1xi32>
    %33 = vector.broadcast %31 : i32 to vector<16x1xi32>
    %34 = arith.addi %33, %32 : vector<16x1xi32>
    %c16_i32_10 = arith.constant 16 : i32
    %35 = vector.broadcast %c16_i32_10 : i32 to vector<16x1xi32>
    %36 = arith.cmpi slt, %34, %35 : vector<16x1xi32>
    %cst_11 = arith.constant 0.000000e+00 : f32
    %37 = vector.broadcast %cst_11 : f32 to vector<16x1xf32>
    %38 = arith.select %36, %29, %37 : vector<16x1xi1>, vector<16x1xf32>
    %cst_12 = arith.constant dense<0.000000e+00> : vector<1xf32>
    %39 = vector.multi_reduction <add>, %38, %cst_12 [0] : vector<16x1xf32> to vector<1xf32>
    %40 = vector.shape_cast %39 : vector<1xf32> to vector<1x1xf32>
    %41 = vector.shape_cast %40 : vector<1x1xf32> to vector<1x1x1xf32>
    %c0_13 = arith.constant 0 : index
    %c0_14 = arith.constant 0 : index
    %c0_15 = arith.constant 0 : index
    %42 = vector.load %arg4[%c0_13, %c0_14, %c0_15] : memref<1x1x1xf32, #tpu.memory_space<vmem>>, vector<1x1x1xf32>
    tpu.vector_store %arg4[%c0_13, %c0_14, %c0_15], %41 {strides = array<i32>} : memref<1x1x1xf32, #tpu.memory_space<vmem>>, vector<1x1x1xf32>,
    return
  }
  func.func @transform_0(%arg0: i32) -> (i32, i32) {
    %c0_i32 = arith.constant 0 : i32
    %c0_i32_0 = arith.constant 0 : i32
    return %arg0, %c0_i32 : i32, i32
  }
  func.func @transform_1(%arg0: i32) -> (i32, i32) {
    %c0_i32 = arith.constant 0 : i32
    %c0_i32_0 = arith.constant 0 : i32
    %c0_i32_1 = arith.constant 0 : i32
    return %c0_i32, %c0_i32_0 : i32, i32
  }
  func.func @transform_2(%arg0: i32) -> (i32, i32) {
    %c0_i32 = arith.constant 0 : i32
    %c0_i32_0 = arith.constant 0 : i32
    return %arg0, %c0_i32 : i32, i32
  }
  func.func @transform_3(%arg0: i32) -> (i32, i32, i32) {
    %c0_i32 = arith.constant 0 : i32
    %c0_i32_0 = arith.constant 0 : i32
    %c0_i32_1 = arith.constant 0 : i32
    return %arg0, %c0_i32, %c0_i32_0 : i32, i32, i32
  }
}

</mosaic_0001>

<llo_original>
// kernel: _bigram_train_call.1
$region0: #{_bigram_train_call.1}
  #allocation0 [shape = 'u32[]', space=smem, size = 0x4, offset = 0x4, fixed_abs, tag = 'smem constant byte address 0x4 - core index']
  #allocation1 [shape = 'u32[72,128]{1,0:T(1,128)}', space=vmem, size = 0x9000, scoped, tag = 'internal scratch']
  %s0 = inlined_call_operand.vmem [shape: s32[16,2], index: 0, kind: input, shape index: {}]
  %s1 = inlined_call_operand.hbm [shape: f32[128,128], index: 1, kind: input, shape index: {}]
  %s2 = inlined_call_operand.hbm [shape: f32[16,128], index: 2, kind: output, shape index: {0}]
  %s3 = inlined_call_operand.hbm [shape: f32[1,1,1], index: 3, kind: output, shape index: {1}]
  %4 = xla_tuple %s2, %s3
  %s5 = sld [smem:[#allocation0]]
  $region30: #{_bigram_train_call.1} parent=0
    _
  %s7 = ssub.s32 1, %s5
  %s8 = scalar_select 0, %s7, %s5
  $region1: #{_bigram_train_call.1} parent=0
    #allocation2 [shape = 'u8[65536]{0}', space=vmem, size = 0x10000, scoped, tag = 'input window, operand 1, single buffered']
    #allocation3 [shape = 's32[1]{0}', space=sflag, size = 0x4, scoped, tag = 'scoped memory for _bigram_train_call.1']
    #allocation4 [shape = 's32[1]{0}', space=sflag, size = 0x4, scoped, tag = 'scoped memory for _bigram_train_call.1']
    #allocation5 [shape = 'u8[8192]{0}', space=vmem, size = 0x2000, scoped, tag = 'output window, operand 0, single buffered']
    #allocation6 [shape = 'u8[512]{0}', space=vmem, size = 0x400, scoped, tag = 'output window, operand 1, single buffered']
    #allocation7 [shape = 's32[1]{0}', space=sflag, size = 0x4, scoped, tag = 'scoped memory for _bigram_train_call.1']
    %9 = vsyncpa [#allocation3], 0
    %10 = vsyncpa [#allocation4], 0
    %11 = vsyncpa [#allocation7], 0
    // Predicated region
    $region2: #{_bigram_train_call.1} parent=1 // pred_check
      _
    $region3: #{_bigram_train_call.1} parent=1 // pred_check_branch
      %13 = sbr.rel (0) target = $region5
    $region4: #{_bigram_train_call.1} parent=1 // pred_region
      _
    $region5: #{_bigram_train_call.1} parent=1 // pred_fallthru
      _
    // Predicated region
    $region6: #{_bigram_train_call.1} parent=1 // pred_check
      _
    $region7: #{_bigram_train_call.1} parent=1 // pred_check_branch
      %15 = sbr.rel (0) target = $region9
    $region8: #{_bigram_train_call.1} parent=1 // pred_region
      %17 = vsyncadd [#allocation3], 0
      %s18 = sshll.u32 %s1, 4
      %s19 = int_to_ptr.hbm [resolvable:$true] %s18
      %s20 = sshll.u32 [#allocation2], 4
      %s21 = int_to_ptr.vmem [resolvable:$true] %s20
      %26 = dma.hbm_to_vmem [thread:$0]  %s19, 2048, %s21, [#allocation3], 128, 128, 8
    $region9: #{_bigram_train_call.1} parent=1 // pred_fallthru
      _
    // Predicated region
    $region10: #{_bigram_train_call.1} parent=1 // pred_check
      _
    $region11: #{_bigram_train_call.1} parent=1 // pred_check_branch
      %28 = sbr.rel (0) target = $region13
    $region12: #{_bigram_train_call.1} parent=1 // pred_region
      %30 = dma.done [#allocation3], 2048
    $region13: #{_bigram_train_call.1} parent=1 // pred_fallthru
      _
    %v31 = vlaneseq
    %v32 = vand.u32 %v31, 127
    %v33 = vld [vmem:[%s0] sm:$0xff]
    %v34 = vld [vmem:[%s0 + $0x8] sm:$0xff]
    %35 = vset.pattern.permute.xlu0 0
    %36 = vperm.xlu0 %35, %v33
    %v37 = vpop.permute.xlu0 %36
    %38 = vset.pattern.permute.xlu0 0
    %39 = vperm.xlu0 %38, %v34
    %v40 = vpop.permute.xlu0 %39
    %vm41 = vcmp.eq.s32.totalorder %v32, %v37
    %vm42 = vcmp.eq.s32.totalorder %v32, %v40
    %v43 = vsel %vm41, 1, 0
    %v44 = vsel %vm42, 1, 0
    %v45 = vcvt.s32.f32 %v43
    %v46 = vcvt.s32.f32 %v44
    %v47 = vld [vmem:[#allocation2] sm:$0xff]
    %v48 = vld [vmem:[#allocation2 + $0x8] sm:$0xff]
    %v49 = vld [vmem:[#allocation2 + $0x10] sm:$0xff]
    %v50 = vld [vmem:[#allocation2 + $0x18] sm:$0xff]
    %v51 = vld [vmem:[#allocation2 + $0x20] sm:$0xff]
    %v52 = vld [vmem:[#allocation2 + $0x28] sm:$0xff]
    %v53 = vld [vmem:[#allocation2 + $0x30] sm:$0xff]
    %v54 = vld [vmem:[#allocation2 + $0x38] sm:$0xff]
    %v55 = vld [vmem:[#allocation2 + $0x40] sm:$0xff]
    %v56 = vld [vmem:[#allocation2 + $0x48] sm:$0xff]
    %v57 = vld [vmem:[#allocation2 + $0x50] sm:$0xff]
    %v58 = vld [vmem:[#allocation2 + $0x58] sm:$0xff]
    %v59 = vld [vmem:[#allocation2 + $0x60] sm:$0xff]
    %v60 = vld [vmem:[#allocation2 + $0x68] sm:$0xff]
    %v61 = vld [vmem:[#allocation2 + $0x70] sm:$0xff]
    %v62 = vld [vmem:[#allocation2 + $0x78] sm:$0xff]
    %v63 = vand.u32 %v62, 4294901760
    %64 = vmatpush.msra.mxu0 %v63
    %v65 = vand.u32 %v61, 4294901760
    %66 = vmatpush.msra.mxu0 %v65
    %v67 = vand.u32 %v60, 4294901760
    %68 = vmatpush.msra.mxu0 %v67
    %v69 = vand.u32 %v59, 4294901760
    %70 = vmatpush.msra.mxu0 %v69
    %v71 = vand.u32 %v58, 4294901760
    %72 = vmatpush.msra.mxu0 %v71
    %v73 = vand.u32 %v57, 4294901760
    %74 = vmatpush.msra.mxu0 %v73
    %v75 = vand.u32 %v56, 4294901760
    %76 = vmatpush.msra.mxu0 %v75
    %v77 = vand.u32 %v55, 4294901760
    %78 = vmatpush.msra.mxu0 %v77
    %v79 = vand.u32 %v54, 4294901760
    %80 = vmatpush.msra.mxu0 %v79
    %v81 = vand.u32 %v53, 4294901760
    %82 = vmatpush.msra.mxu0 %v81
    %v83 = vand.u32 %v52, 4294901760
    %84 = vmatpush.msra.mxu0 %v83
    %v85 = vand.u32 %v51, 4294901760
    %86 = vmatpush.msra.mxu0 %v85
    %v87 = vand.u32 %v50, 4294901760
    %88 = vmatpush.msra.mxu0 %v87
    %v89 = vand.u32 %v49, 4294901760
    %90 = vmatpush.msra.mxu0 %v89
    %v91 = vand.u32 %v48, 4294901760
    %92 = vmatpush.msra.mxu0 %v91
    %v93 = vand.u32 %v47, 4294901760
    %94 = vmatpush.msra.mxu0 %v93
    %v95 = vand.u32 %v45, 4294901760
    %v96 = vsub.f32 %v45, %v95
    %v97 = vand.u32 %v96, 4294901760
    %v98 = vsub.f32 %v96, %v97
    %v99 = vand.u32 %v98, 4294901760
    %100 = vmatmul.f32.gmra.mxu0 %v99
    %v101 = vpop.f32.mrf.mxu0
    %v102 = vadd.f32 0.0, %v101
    %v103 = vand.u32 %v46, 4294901760
    %v104 = vsub.f32 %v46, %v103
    %v105 = vand.u32 %v104, 4294901760
    %v106 = vsub.f32 %v104, %v105
    %v107 = vand.u32 %v106, 4294901760
    %108 = vmatmul.f32.gmra.mxu0 %v107
    %v109 = vpop.f32.mrf.mxu0
    %v110 = vadd.f32 0.0, %v109
    %111 = vdwg.mxu0
    %v112 = vand.u32 %v62, 4294901760
    %v113 = vsub.f32 %v62, %v112
    %v114 = vand.u32 %v113, 4294901760
    %v115 = vsub.f32 %v113, %v114
    %v116 = vand.u32 %v115, 4294901760
    %117 = vmatpush.msra.mxu0 %v116
    %v118 = vand.u32 %v61, 4294901760
    %v119 = vsub.f32 %v61, %v118
    %v120 = vand.u32 %v119, 4294901760
    %v121 = vsub.f32 %v119, %v120
    %v122 = vand.u32 %v121, 4294901760
    %123 = vmatpush.msra.mxu0 %v122
    %v124 = vand.u32 %v60, 4294901760
    %v125 = vsub.f32 %v60, %v124
    %v126 = vand.u32 %v125, 4294901760
    %v127 = vsub.f32 %v125, %v126
    %v128 = vand.u32 %v127, 4294901760
    %129 = vmatpush.msra.mxu0 %v128
    %v130 = vand.u32 %v59, 4294901760
    %v131 = vsub.f32 %v59, %v130
    %v132 = vand.u32 %v131, 4294901760
    %v133 = vsub.f32 %v131, %v132
    %v134 = vand.u32 %v133, 4294901760
    %135 = vmatpush.msra.mxu0 %v134
    %v136 = vand.u32 %v58, 4294901760
    %v137 = vsub.f32 %v58, %v136
    %v138 = vand.u32 %v137, 4294901760
    %v139 = vsub.f32 %v137, %v138
    %v140 = vand.u32 %v139, 4294901760
    %141 = vmatpush.msra.mxu0 %v140
    %v142 = vand.u32 %v57, 4294901760
    %v143 = vsub.f32 %v57, %v142
    %v144 = vand.u32 %v143, 4294901760
    %v145 = vsub.f32 %v143, %v144
    %v146 = vand.u32 %v145, 4294901760
    %147 = vmatpush.msra.mxu0 %v146
    %v148 = vand.u32 %v56, 4294901760
    %v149 = vsub.f32 %v56, %v148
    %v150 = vand.u32 %v149, 4294901760
    %v151 = vsub.f32 %v149, %v150
    %v152 = vand.u32 %v151, 4294901760
    %153 = vmatpush.msra.mxu0 %v152
    %v154 = vand.u32 %v55, 4294901760
    %v155 = vsub.f32 %v55, %v154
    %v156 = vand.u32 %v155, 4294901760
    %v157 = vsub.f32 %v155, %v156
    %v158 = vand.u32 %v157, 4294901760
    %159 = vmatpush.msra.mxu0 %v158
    %v160 = vand.u32 %v54, 4294901760
    %v161 = vsub.f32 %v54, %v160
    %v162 = vand.u32 %v161, 4294901760
    %v163 = vsub.f32 %v161, %v162
    %v164 = vand.u32 %v163, 4294901760
    %165 = vmatpush.msra.mxu0 %v164
    %v166 = vand.u32 %v53, 4294901760
    %v167 = vsub.f32 %v53, %v166
    %v168 = vand.u32 %v167, 4294901760
    %v169 = vsub.f32 %v167, %v168
    %v170 = vand.u32 %v169, 4294901760
    %171 = vmatpush.msra.mxu0 %v170
    %v172 = vand.u32 %v52, 4294901760
    %v173 = vsub.f32 %v52, %v172
    %v174 = vand.u32 %v173, 4294901760
    %v175 = vsub.f32 %v173, %v174
    %v176 = vand.u32 %v175, 4294901760
    %177 = vmatpush.msra.mxu0 %v176
    %v178 = vand.u32 %v51, 4294901760
    %v179 = vsub.f32 %v51, %v178
    %v180 = vand.u32 %v179, 4294901760
    %v181 = vsub.f32 %v179, %v180
    %v182 = vand.u32 %v181, 4294901760
    %183 = vmatpush.msra.mxu0 %v182
    %v184 = vand.u32 %v50, 4294901760
    %v185 = vsub.f32 %v50, %v184
    %v186 = vand.u32 %v185, 4294901760
    %v187 = vsub.f32 %v185, %v186
    %v188 = vand.u32 %v187, 4294901760
    %189 = vmatpush.msra.mxu0 %v188
    %v190 = vand.u32 %v49, 4294901760
    %v191 = vsub.f32 %v49, %v190
    %v192 = vand.u32 %v191, 4294901760
    %v193 = vsub.f32 %v191, %v192
    %v194 = vand.u32 %v193, 4294901760
    %195 = vmatpush.msra.mxu0 %v194
    %v196 = vand.u32 %v48, 4294901760
    %v197 = vsub.f32 %v48, %v196
    %v198 = vand.u32 %v197, 4294901760
    %v199 = vsub.f32 %v197, %v198
    %v200 = vand.u32 %v199, 4294901760
    %201 = vmatpush.msra.mxu0 %v200
    %v202 = vand.u32 %v47, 4294901760
    %v203 = vsub.f32 %v47, %v202
    %v204 = vand.u32 %v203, 4294901760
    %v205 = vsub.f32 %v203, %v204
    %v206 = vand.u32 %v205, 4294901760
    %207 = vmatpush.msra.mxu0 %v206
    %v208 = vand.u32 %v45, 4294901760
    %209 = vmatmul.f32.gmra.mxu0 %v208
    %v210 = vpop.f32.mrf.mxu0
    %v211 = vadd.f32 %v102, %v210
    %v212 = vand.u32 %v46, 4294901760
    %213 = vmatmul.f32.gmra.mxu0 %v212
    %v214 = vpop.f32.mrf.mxu0
    %v215 = vadd.f32 %v110, %v214
    %216 = vdwg.mxu0
    %v217 = vand.u32 %v62, 4294901760
    %v218 = vsub.f32 %v62, %v217
    %219 = vmatpush.msra.mxu0 %v218
    %v220 = vand.u32 %v61, 4294901760
    %v221 = vsub.f32 %v61, %v220
    %222 = vmatpush.msra.mxu0 %v221
    %v223 = vand.u32 %v60, 4294901760
    %v224 = vsub.f32 %v60, %v223
    %225 = vmatpush.msra.mxu0 %v224
    %v226 = vand.u32 %v59, 4294901760
    %v227 = vsub.f32 %v59, %v226
    %228 = vmatpush.msra.mxu0 %v227
    %v229 = vand.u32 %v58, 4294901760
    %v230 = vsub.f32 %v58, %v229
    %231 = vmatpush.msra.mxu0 %v230
    %v232 = vand.u32 %v57, 4294901760
    %v233 = vsub.f32 %v57, %v232
    %234 = vmatpush.msra.mxu0 %v233
    %v235 = vand.u32 %v56, 4294901760
    %v236 = vsub.f32 %v56, %v235
    %237 = vmatpush.msra.mxu0 %v236
    %v238 = vand.u32 %v55, 4294901760
    %v239 = vsub.f32 %v55, %v238
    %240 = vmatpush.msra.mxu0 %v239
    %v241 = vand.u32 %v54, 4294901760
    %v242 = vsub.f32 %v54, %v241
    %243 = vmatpush.msra.mxu0 %v242
    %v244 = vand.u32 %v53, 4294901760
    %v245 = vsub.f32 %v53, %v244
    %246 = vmatpush.msra.mxu0 %v245
    %v247 = vand.u32 %v52, 4294901760
    %v248 = vsub.f32 %v52, %v247
    %249 = vmatpush.msra.mxu0 %v248
    %v250 = vand.u32 %v51, 4294901760
    %v251 = vsub.f32 %v51, %v250
    %252 = vmatpush.msra.mxu0 %v251
    %v253 = vand.u32 %v50, 4294901760
    %v254 = vsub.f32 %v50, %v253
    %255 = vmatpush.msra.mxu0 %v254
    %v256 = vand.u32 %v49, 4294901760
    %v257 = vsub.f32 %v49, %v256
    %258 = vmatpush.msra.mxu0 %v257
    %v259 = vand.u32 %v48, 4294901760
    %v260 = vsub.f32 %v48, %v259
    %261 = vmatpush.msra.mxu0 %v260
    %v262 = vand.u32 %v47, 4294901760
    %v263 = vsub.f32 %v47, %v262
    %264 = vmatpush.msra.mxu0 %v263
    %v265 = vand.u32 %v45, 4294901760
    %v266 = vsub.f32 %v45, %v265
    %267 = vmatmul.f32.gmra.mxu0 %v266
    %v268 = vpop.f32.mrf.mxu0
    %v269 = vadd.f32 %v211, %v268
    %v270 = vand.u32 %v46, 4294901760
    %v271 = vsub.f32 %v46, %v270
    %272 = vmatmul.f32.gmra.mxu0 %v271
    %v273 = vpop.f32.mrf.mxu0
    %v274 = vadd.f32 %v215, %v273
    %275 = vdwg.mxu0
    %v276 = vand.u32 %v62, 4294901760
    %277 = vmatpush.msra.mxu0 %v276
    %v278 = vand.u32 %v61, 4294901760
    %279 = vmatpush.msra.mxu0 %v278
    %v280 = vand.u32 %v60, 4294901760
    %281 = vmatpush.msra.mxu0 %v280
    %v282 = vand.u32 %v59, 4294901760
    %283 = vmatpush.msra.mxu0 %v282
    %v284 = vand.u32 %v58, 4294901760
    %285 = vmatpush.msra.mxu0 %v284
    %v286 = vand.u32 %v57, 4294901760
    %287 = vmatpush.msra.mxu0 %v286
    %v288 = vand.u32 %v56, 4294901760
    %289 = vmatpush.msra.mxu0 %v288
    %v290 = vand.u32 %v55, 4294901760
    %291 = vmatpush.msra.mxu0 %v290
    %v292 = vand.u32 %v54, 4294901760
    %293 = vmatpush.msra.mxu0 %v292
    %v294 = vand.u32 %v53, 4294901760
    %295 = vmatpush.msra.mxu0 %v294
    %v296 = vand.u32 %v52, 4294901760
    %297 = vmatpush.msra.mxu0 %v296
    %v298 = vand.u32 %v51, 4294901760
    %299 = vmatpush.msra.mxu0 %v298
    %v300 = vand.u32 %v50, 4294901760
    %301 = vmatpush.msra.mxu0 %v300
    %v302 = vand.u32 %v49, 4294901760
    %303 = vmatpush.msra.mxu0 %v302
    %v304 = vand.u32 %v48, 4294901760
    %305 = vmatpush.msra.mxu0 %v304
    %v306 = vand.u32 %v47, 4294901760
    %307 = vmatpush.msra.mxu0 %v306
    %v308 = vand.u32 %v45, 4294901760
    %v309 = vsub.f32 %v45, %v308
    %v310 = vand.u32 %v309, 4294901760
    %311 = vmatmul.f32.gmra.mxu0 %v310
    %v312 = vpop.f32.mrf.mxu0
    %v313 = vadd.f32 %v269, %v312
    %v314 = vand.u32 %v46, 4294901760
    %v315 = vsub.f32 %v46, %v314
    %v316 = vand.u32 %v315, 4294901760
    %317 = vmatmul.f32.gmra.mxu0 %v316
    %v318 = vpop.f32.mrf.mxu0
    %v319 = vadd.f32 %v274, %v318
    %320 = vdwg.mxu0
    %v321 = vand.u32 %v62, 4294901760
    %v322 = vsub.f32 %v62, %v321
    %v323 = vand.u32 %v322, 4294901760
    %324 = vmatpush.msra.mxu0 %v323
    %v325 = vand.u32 %v61, 4294901760
    %v326 = vsub.f32 %v61, %v325
    %v327 = vand.u32 %v326, 4294901760
    %328 = vmatpush.msra.mxu0 %v327
    %v329 = vand.u32 %v60, 4294901760
    %v330 = vsub.f32 %v60, %v329
    %v331 = vand.u32 %v330, 4294901760
    %332 = vmatpush.msra.mxu0 %v331
    %v333 = vand.u32 %v59, 4294901760
    %v334 = vsub.f32 %v59, %v333
    %v335 = vand.u32 %v334, 4294901760
    %336 = vmatpush.msra.mxu0 %v335
    %v337 = vand.u32 %v58, 4294901760
    %v338 = vsub.f32 %v58, %v337
    %v339 = vand.u32 %v338, 4294901760
    %340 = vmatpush.msra.mxu0 %v339
    %v341 = vand.u32 %v57, 4294901760
    %v342 = vsub.f32 %v57, %v341
    %v343 = vand.u32 %v342, 4294901760
    %344 = vmatpush.msra.mxu0 %v343
    %v345 = vand.u32 %v56, 4294901760
    %v346 = vsub.f32 %v56, %v345
    %v347 = vand.u32 %v346, 4294901760
    %348 = vmatpush.msra.mxu0 %v347
    %v349 = vand.u32 %v55, 4294901760
    %v350 = vsub.f32 %v55, %v349
    %v351 = vand.u32 %v350, 4294901760
    %352 = vmatpush.msra.mxu0 %v351
    %v353 = vand.u32 %v54, 4294901760
    %v354 = vsub.f32 %v54, %v353
    %v355 = vand.u32 %v354, 4294901760
    %356 = vmatpush.msra.mxu0 %v355
    %v357 = vand.u32 %v53, 4294901760
    %v358 = vsub.f32 %v53, %v357
    %v359 = vand.u32 %v358, 4294901760
    %360 = vmatpush.msra.mxu0 %v359
    %v361 = vand.u32 %v52, 4294901760
    %v362 = vsub.f32 %v52, %v361
    %v363 = vand.u32 %v362, 4294901760
    %364 = vmatpush.msra.mxu0 %v363
    %v365 = vand.u32 %v51, 4294901760
    %v366 = vsub.f32 %v51, %v365
    %v367 = vand.u32 %v366, 4294901760
    %368 = vmatpush.msra.mxu0 %v367
    %v369 = vand.u32 %v50, 4294901760
    %v370 = vsub.f32 %v50, %v369
    %v371 = vand.u32 %v370, 4294901760
    %372 = vmatpush.msra.mxu0 %v371
    %v373 = vand.u32 %v49, 4294901760
    %v374 = vsub.f32 %v49, %v373
    %v375 = vand.u32 %v374, 4294901760
    %376 = vmatpush.msra.mxu0 %v375
    %v377 = vand.u32 %v48, 4294901760
    %v378 = vsub.f32 %v48, %v377
    %v379 = vand.u32 %v378, 4294901760
    %380 = vmatpush.msra.mxu0 %v379
    %v381 = vand.u32 %v47, 4294901760
    %v382 = vsub.f32 %v47, %v381
    %v383 = vand.u32 %v382, 4294901760
    %384 = vmatpush.msra.mxu0 %v383
    %v385 = vand.u32 %v45, 4294901760
    %386 = vmatmul.f32.gmra.mxu0 %v385
    %v387 = vpop.f32.mrf.mxu0
    %v388 = vadd.f32 %v313, %v387
    %v389 = vand.u32 %v46, 4294901760
    %390 = vmatmul.f32.gmra.mxu0 %v389
    %v391 = vpop.f32.mrf.mxu0
    %v392 = vadd.f32 %v319, %v391
    %393 = vdwg.mxu0
    %v394 = vand.u32 %v62, 4294901760
    %395 = vmatpush.msra.mxu0 %v394
    %v396 = vand.u32 %v61, 4294901760
    %397 = vmatpush.msra.mxu0 %v396
    %v398 = vand.u32 %v60, 4294901760
    %399 = vmatpush.msra.mxu0 %v398
    %v400 = vand.u32 %v59, 4294901760
    %401 = vmatpush.msra.mxu0 %v400
    %v402 = vand.u32 %v58, 4294901760
    %403 = vmatpush.msra.mxu0 %v402
    %v404 = vand.u32 %v57, 4294901760
    %405 = vmatpush.msra.mxu0 %v404
    %v406 = vand.u32 %v56, 4294901760
    %407 = vmatpush.msra.mxu0 %v406
    %v408 = vand.u32 %v55, 4294901760
    %409 = vmatpush.msra.mxu0 %v408
    %v410 = vand.u32 %v54, 4294901760
    %411 = vmatpush.msra.mxu0 %v410
    %v412 = vand.u32 %v53, 4294901760
    %413 = vmatpush.msra.mxu0 %v412
    %v414 = vand.u32 %v52, 4294901760
    %415 = vmatpush.msra.mxu0 %v414
    %v416 = vand.u32 %v51, 4294901760
    %417 = vmatpush.msra.mxu0 %v416
    %v418 = vand.u32 %v50, 4294901760
    %419 = vmatpush.msra.mxu0 %v418
    %v420 = vand.u32 %v49, 4294901760
    %421 = vmatpush.msra.mxu0 %v420
    %v422 = vand.u32 %v48, 4294901760
    %423 = vmatpush.msra.mxu0 %v422
    %v424 = vand.u32 %v47, 4294901760
    %425 = vmatpush.msra.mxu0 %v424
    %v426 = vand.u32 %v45, 4294901760
    %427 = vmatmul.f32.gmra.mxu0 %v426
    %v428 = vpop.f32.mrf.mxu0
    %v429 = vadd.f32 %v388, %v428
    %v430 = vand.u32 %v46, 4294901760
    %431 = vmatmul.f32.gmra.mxu0 %v430
    %v432 = vpop.f32.mrf.mxu0
    %v433 = vadd.f32 %v392, %v432
    %434 = vdwg.mxu0
    %vm435 = vcmp.lt.s32.totalorder %v32, 65
    %v436 = vsel %vm435, %v429, -1e+30
    %v437 = vsel %vm435, %v433, -1e+30
    %438 = vmax.xlane.f32.xlu0 %v436
    %v439 = vpop.xlane.xlu0 %438
    %440 = vmax.xlane.f32.xlu0 %v437
    %v441 = vpop.xlane.xlu0 %440
    %v442 = vsub.f32 %v436, %v439
    %v443 = vsub.f32 %v437, %v441
    %v444 = vmul.f32 %v442, 1.442695
    %v445 = vpow.pop %v444
    %v446 = vmul.f32 %v443, 1.442695
    %v447 = vpow.pop %v446
    %448 = vadd.xlane.f32.xlu0 %v445
    %v449 = vpop.xlane.xlu0 %448
    %450 = vadd.xlane.f32.xlu0 %v447
    %v451 = vpop.xlane.xlu0 %450
    %v452 = vlog2.pop %v449
    %v453 = vmul.f32 %v452, 0.6931472
    %v454 = vlog2.pop %v451
    %v455 = vmul.f32 %v454, 0.6931472
    %v456 = vadd.f32 %v439, %v453
    %v457 = vadd.f32 %v441, %v455
    %458 = vset.pattern.permute.xlu0 1
    %459 = vperm.xlu0 %458, %v33
    %v460 = vpop.permute.xlu0 %459
    %461 = vset.pattern.permute.xlu0 1
    %462 = vperm.xlu0 %461, %v34
    %v463 = vpop.permute.xlu0 %462
    %vm464 = vcmp.eq.s32.totalorder %v32, %v460
    %vm465 = vcmp.eq.s32.totalorder %v32, %v463
    %v466 = vsel %vm464, %v436, 0.0
    %v467 = vsel %vm465, %v437, 0.0
    %468 = vadd.xlane.f32.xlu0 %v466
    %v469 = vpop.xlane.xlu0 %468
    %470 = vadd.xlane.f32.xlu0 %v467
    %v471 = vpop.xlane.xlu0 %470
    %v472 = vsub.f32 %v456, %v469
    %v473 = vsub.f32 %v457, %v471
    %474 = vst [vmem:[#allocation5] sm:$0xff] %v436
    %475 = vst [vmem:[#allocation5 + $0x8] sm:$0xff] %v437
    %s476 = smul.u32 0, 16
    %v477 = vlaneseq
    %v478 = vshrl.u32 %v477, 7
    %v479 = vadd.s32 %v478, 8
    %v480 = vstv %s476
    %v481 = vadd.s32 %v480, %v478
    %v482 = vadd.s32 %v480, %v479
    %vm483 = vcmp.lt.s32.totalorder %v481, 16
    %vm484 = vcmp.lt.s32.totalorder %v482, 16
    %v485 = vsel %vm483, %v472, 0.0
    %v486 = vsel %vm484, %v473, 0.0
    %v487 = vadd.f32 %v485, %v486
    %v488 = vrot.slane %v487, 4
    %v489 = vadd.f32 %v487, %v488
    %v490 = vrot.slane %v489, 2
    %v491 = vadd.f32 %v489, %v490
    %v492 = vrot.slane %v491, 1
    %v493 = vadd.f32 %v491, %v492
    %vm494 = vcmask 0
    %495 = vst.msk [vmem:[#allocation6] sm:$0x1] %vm494, %v493
    // Predicated region
    $region14: #{_bigram_train_call.1} parent=1 // pred_check
      _
    $region15: #{_bigram_train_call.1} parent=1 // pred_check_branch
      %497 = sbr.rel (0) target = $region17
    $region16: #{_bigram_train_call.1} parent=1 // pred_region
      %499 = vsyncadd [#allocation4], 0
      %s500 = sshll.u32 [#allocation5], 4
      %s501 = int_to_ptr.vmem [resolvable:$true] %s500
      %s502 = sshll.u32 %s2, 4
      %s503 = int_to_ptr.hbm [resolvable:$true] %s502
      %508 = dma.vmem_to_hbm [thread:$0]  %s501, 256, %s503, [#allocation4], 128, 128, 8
    $region17: #{_bigram_train_call.1} parent=1 // pred_fallthru
      _
    // Predicated region
    $region18: #{_bigram_train_call.1} parent=1 // pred_check
      _
    $region19: #{_bigram_train_call.1} parent=1 // pred_check_branch
      %510 = sbr.rel (0) target = $region21
    $region20: #{_bigram_train_call.1} parent=1 // pred_region
      %512 = vsyncadd [#allocation7], 0
      %s514 = sshll.u32 [#allocation6], 4
      %s515 = int_to_ptr.vmem [resolvable:$true] %s514
      %s516 = sshll.u32 %s3, 4
      %s517 = int_to_ptr.hbm [resolvable:$true] %s516
      %519 = dma.vmem_to_hbm [thread:$0]  %s515, 16, %s517, [#allocation7]
    $region21: #{_bigram_train_call.1} parent=1 // pred_fallthru
      _
    // Predicated region
    $region22: #{_bigram_train_call.1} parent=1 // pred_check
      _
    $region23: #{_bigram_train_call.1} parent=1 // pred_check_branch
      %521 = sbr.rel (0) target = $region25
    $region24: #{_bigram_train_call.1} parent=1 // pred_region
      %523 = dma.done [#allocation4], 256
    $region25: #{_bigram_train_call.1} parent=1 // pred_fallthru
      _
    // Predicated region
    $region26: #{_bigram_train_call.1} parent=1 // pred_check
      _
    $region27: #{_bigram_train_call.1} parent=1 // pred_check_branch
      %525 = sbr.rel (0) target = $region29
    $region28: #{_bigram_train_call.1} parent=1 // pred_region
      %527 = dma.done [#allocation7], 16
    $region29: #{_bigram_train_call.1} parent=1 // pred_fallthru
      _
    %528 = vsyncpa [#allocation3], 1
    %529 = vsyncpa [#allocation4], 1
    %530 = vsyncpa [#allocation7], 1

</llo_original>
